<compile_context>
chip_gen: v6e
topology: v6e:2x2x1
jax: 0.10.0
libtpu: 0.0.40
codegen_flags: <defaults>
</compile_context>

<pallas_src>
import functools

import jax
import jax.numpy as jnp
from jax.experimental import pallas as pl
from jax.experimental.pallas import tpu as pltpu


def _feature_correlation_kernel(a_ref, b_ref, o_ref, *, normalization):
    # a_ref: (Cp, HWk)  feature_A per batch, lane axis = k (= wA*h + hA)
    # b_ref: (Cp, TJ)   feature_B tile per batch, lane axis = j (= hB*w + wB)
    # o_ref: (HWk, TJ)  M_t[k, j] (ReLU + L2-normalized over k if requested)
    #
    # Contract over c (dim 0 of both operands): M_t = A^T @ B.  Both operands
    # arrive lane-dense (spatial index on the 128-lane axis), so tiny c does
    # not blow up VMEM with lane padding or masked loads.
    m = jax.lax.dot_general(
        a_ref[...], b_ref[...],
        dimension_numbers=(((0,), (0,)), ((), ())),
        preferred_element_type=jnp.float32,
    )
    if normalization:
        m = jnp.maximum(m, 0.0)  # ReLU
        # featureL2Norm over dim 1 of the final correlation tensor == axis k
        # here (axis 0 of this block; the block holds all of k, single pass).
        inv = jax.lax.rsqrt(jnp.sum(m * m, axis=0, keepdims=True) + 1e-6)
        m = m * inv
    o_ref[...] = m.astype(o_ref.dtype)


def _round_up(x, m):
    return (x + m - 1) // m * m


def _vmem_capacity_bytes():
    """Physical VMEM of the current chip; conservative fallback = v7x (64 MiB)."""
    try:
        cap = getattr(pltpu.get_tpu_info(), "vmem_capacity_bytes", None)
        if cap:
            return int(cap)
    except Exception:
        pass
    return 64 * 1024 * 1024


def _pick_j_tile(hw, c_pad, in_isz, out_isz, budget_bytes, batch,
                 max_tile=1024):
    """j-tile width (multiple of 128) sized from the VMEM budget.

    The A block (c_pad, hw) is revisit-resident across j, B and output blocks
    are double-buffered, and the normalization epilogue needs roughly two
    extra f32 copies of the output block.
    """
    hw128 = _round_up(hw, 128)
    fixed = 2 * c_pad * hw * in_isz                      # A (double-buffered)
    per_col = (2 * c_pad * in_isz                        # B block
               + 2 * hw * out_isz                        # output block
               + 2 * hw * 4)                             # f32 epilogue temps
    tj = (budget_bytes - fixed) // max(per_col, 1)
    tj = max(128, min(int(tj), max_tile, hw128))
    tj = (tj // 128) * 128
    # v7x megacore: with batch == 1 keep >= 2 j-tiles so the 2nd TC has work.
    if batch == 1 and hw128 > 128:
        tj = min(tj, max(128, (hw128 // 2) // 128 * 128))
    # Re-balance so the padded column count overshoots hw by < one tile.
    n_tiles = -(-hw128 // tj)
    tj = _round_up(-(-hw128 // n_tiles), 128)
    return tj


def feature_correlation(feature_A, feature_B, normalization=True,
                        compute_dtype=None, out_dtype=jnp.float32):
    """JAX/Pallas equivalent of FeatureCorrelation(shape='3D').forward.

    compute_dtype: dtype the matmul operands are fed to the MXU in
        (jnp.bfloat16 gives ~2-4x MXU throughput and halves input DMA traffic;
        accumulation stays f32).  None -> keep the input dtype.
    out_dtype: dtype of the returned correlation tensor (f32 matches PyTorch;
        bf16 halves the dominant (b, hw, hw) HBM writeback if tolerated).
    """
    b, c, h, w = feature_A.shape
    hw = h * w
    if compute_dtype is None:
        compute_dtype = feature_A.dtype
    in_isz = jnp.dtype(compute_dtype).itemsize
    out_isz = jnp.dtype(out_dtype).itemsize

    # Pad the contraction dim (c) so both operand blocks are sublane-dense
    # (zero padding is free numerically).
    c_pad = _round_up(c, max(8, 32 // in_isz))

    vmem_budget = _vmem_capacity_bytes() * 3 // 4   # headroom (48 MiB on v7x)
    tj = _pick_j_tile(hw, c_pad, in_isz, out_isz, vmem_budget, b)
    cols = _round_up(_round_up(hw, 128), tj)        # lane-dense, tj-divisible

    # A: (b,c,h,w) -> (b,c,w,h) -> (b,c,hw), k = wA*h + hA (lane axis = k).
    #    Same elements as PyTorch's transpose(2,3).view(b,c,h*w); keeping c on
    #    the sublane axis avoids the c<128 lane-padding blowup of an (hw, c)
    #    layout.
    a_t = jnp.transpose(feature_A, (0, 1, 3, 2)).reshape(b, c, hw)
    # B: (b,c,h,w) -> (b,c,hw), j = hB*w + wB (lane axis = j).
    b_flat = feature_B.reshape(b, c, hw)

    a_t = a_t.astype(compute_dtype)
    b_flat = b_flat.astype(compute_dtype)

    if c_pad != c:
        a_t = jnp.pad(a_t, ((0, 0), (0, c_pad - c), (0, 0)))
        b_flat = jnp.pad(b_flat, ((0, 0), (0, c_pad - c), (0, 0)))
    if cols != hw:
        b_flat = jnp.pad(b_flat, ((0, 0), (0, 0), (0, cols - hw)))

    kernel = functools.partial(_feature_correlation_kernel,
                               normalization=normalization)

    cost = pl.CostEstimate(
        flops=2 * b * c_pad * hw * cols,
        transcendentals=b * cols,
        bytes_accessed=(in_isz * b * c_pad * (hw + cols)
                        + out_isz * b * hw * cols),
    )

    # TODO(synk): if hw*c or hw*tj ever outgrow the VMEM budget (huge feature
    # maps, esp. on v7x's 64 MiB), the k axis must be tiled too and the
    # single-pass L2 norm replaced by a two-pass / running-accumulator scheme.
    m_t = pl.pallas_call(
        kernel,
        out_shape=jax.ShapeDtypeStruct((b, hw, cols), out_dtype),
        grid_spec=pltpu.PrefetchScalarGridSpec(
            num_scalar_prefetch=0,
            grid=(b, cols // tj),
            in_specs=[
                pl.BlockSpec((None, c_pad, hw), lambda i, j: (i, 0, 0)),
                pl.BlockSpec((None, c_pad, tj), lambda i, j: (i, 0, j)),
            ],
            out_specs=pl.BlockSpec((None, hw, tj), lambda i, j: (i, 0, j)),
        ),
        compiler_params=pltpu.CompilerParams(
            dimension_semantics=("parallel", "parallel"),
            vmem_limit_bytes=int(vmem_budget),
        ),
        cost_estimate=cost,
    )(a_t, b_flat)

    # m_t[b, k, j]: slice away j padding (no-op when hw % tj == 0), then a
    # contiguous (free) reshape splits j -> (hB, wB).
    corr = m_t[:, :, :hw].reshape(b, hw, h, w)
    return corr


def _reference(feature_A, feature_B, normalization=True):
    """Pure-JAX reference mimicking the PyTorch code path exactly."""
    b, c, h, w = feature_A.shape
    fa = jnp.transpose(feature_A, (0, 1, 3, 2)).reshape(b, c, h * w)      # (b, c, hw)
    fb = jnp.transpose(feature_B.reshape(b, c, h * w), (0, 2, 1))         # (b, hw, c)
    mul = jnp.einsum("bjc,bck->bjk", fb, fa)                              # bmm
    corr = mul.reshape(b, h, w, h * w)
    corr = jnp.transpose(corr, (0, 1, 3, 2))   # transpose(2,3)
    corr = jnp.transpose(corr, (0, 2, 1, 3))   # transpose(1,2) -> (b, hw, h, w)
    if normalization:
        corr = jnp.maximum(corr, 0.0)
        norm = jnp.sqrt(jnp.sum(corr * corr, axis=1, keepdims=True) + 1e-6)
        corr = corr / norm
    return corr


if __name__ == "__main__":
    key = jax.random.PRNGKey(0)
    k_a, k_b = jax.random.split(key)
    B, C, H, W = 2, 4, 16, 16
    feature_A = jax.random.normal(k_a, (B, C, H, W), dtype=jnp.float32)
    feature_B = jax.random.normal(k_b, (B, C, H, W), dtype=jnp.float32)

    ref = _reference(feature_A, feature_B, normalization=True)

    # f32 path: matches the PyTorch-equivalent reference tightly.
    out = feature_correlation(feature_A, feature_B, normalization=True)
    out = jax.block_until_ready(out)
    assert out.shape == (B, H * W, H, W), out.shape
    assert jnp.allclose(out, ref, atol=1e-5, rtol=1e-5), "f32 mismatch vs reference"

    # bf16 fast path (MXU-native inputs, f32 accumulation): looser tolerance.
    out_bf16 = feature_correlation(feature_A, feature_B, normalization=True,
                                   compute_dtype=jnp.bfloat16)
    out_bf16 = jax.block_until_ready(out_bf16)
    assert out_bf16.shape == (B, H * W, H, W), out_bf16.shape
    assert jnp.allclose(out_bf16, ref, atol=2e-2, rtol=2e-2), "bf16 mismatch vs reference"

    print("KERNEL_OK")
</pallas_src>

<mosaic_0001>
module attributes {stable_mosaic.version = 11 : i64} {
  func.func @_feature_correlation_kernel(%arg0: i32, %arg1: i32, %arg2: memref<1x8x256xf32, #tpu.memory_space<vmem>>, %arg3: memref<1x8x256xf32, #tpu.memory_space<vmem>>, %arg4: memref<1x256x256xf32, #tpu.memory_space<vmem>>) attributes {dimension_semantics = [#tpu.dimension_semantics<parallel>, #tpu.dimension_semantics<parallel>], iteration_bounds = array<i64: 2, 1>, scalar_prefetch = 0 : i64, scratch_operands = 0 : i64, tpu.core_type = #tpu.core_type<tc>, window_params = [{transform_indices = @transform_0, window_bounds = array<i64: 1, 8, 256>}, {transform_indices = @transform_1, window_bounds = array<i64: 1, 8, 256>}, {transform_indices = @transform_2, window_bounds = array<i64: 1, 256, 256>}]} {
    %c0 = arith.constant 0 : index
    %c0_0 = arith.constant 0 : index
    %c0_1 = arith.constant 0 : index
    %0 = vector.load %arg2[%c0, %c0_0, %c0_1] : memref<1x8x256xf32, #tpu.memory_space<vmem>>, vector<1x8x256xf32>
    %1 = vector.shape_cast %0 : vector<1x8x256xf32> to vector<8x256xf32>
    %c0_2 = arith.constant 0 : index
    %c0_3 = arith.constant 0 : index
    %c0_4 = arith.constant 0 : index
    %2 = vector.load %arg3[%c0_2, %c0_3, %c0_4] : memref<1x8x256xf32, #tpu.memory_space<vmem>>, vector<1x8x256xf32>
    %3 = vector.shape_cast %2 : vector<1x8x256xf32> to vector<8x256xf32>
    %cst = arith.constant dense<0.000000e+00> : vector<256x256xf32>
    %4 = tpu.matmul %1, %3, %cst {dimension_numbers = #tpu.dot_dimension_numbers<[0], [0], [1], [1], [0, 1, 1, 1], [], []>} : vector<8x256xf32>, vector<8x256xf32>, vector<256x256xf32> -> vector<256x256xf32>
    %cst_5 = arith.constant 0.000000e+00 : f32
    %5 = vector.broadcast %cst_5 : f32 to vector<256x256xf32>
    %6 = arith.maximumf %4, %5 : vector<256x256xf32>
    %7 = arith.mulf %6, %6 : vector<256x256xf32>
    %cst_6 = arith.constant dense<0.000000e+00> : vector<256xf32>
    %8 = vector.multi_reduction <add>, %7, %cst_6 [0] : vector<256x256xf32> to vector<256xf32>
    %9 = vector.shape_cast %8 : vector<256xf32> to vector<1x256xf32>
    %cst_7 = arith.constant 9.99999997E-7 : f32
    %10 = vector.broadcast %cst_7 : f32 to vector<1x256xf32>
    %11 = arith.addf %9, %10 : vector<1x256xf32>
    %12 = math.rsqrt %11 : vector<1x256xf32>
    %13 = vector.broadcast %12 : vector<1x256xf32> to vector<256x256xf32>
    %14 = arith.mulf %6, %13 : vector<256x256xf32>
    %c0_8 = arith.constant 0 : index
    %c0_9 = arith.constant 0 : index
    %c0_10 = arith.constant 0 : index
    %15 = vector.load %arg4[%c0_8, %c0_9, %c0_10] : memref<1x256x256xf32, #tpu.memory_space<vmem>>, vector<1x256x256xf32>
    %16 = vector.shape_cast %15 : vector<1x256x256xf32> to vector<256x256xf32>
    %17 = vector.shape_cast %14 : vector<256x256xf32> to vector<1x256x256xf32>
    tpu.vector_store %arg4[%c0_8, %c0_9, %c0_10], %17 {strides = array<i32>} : memref<1x256x256xf32, #tpu.memory_space<vmem>>, vector<1x256x256xf32>,
    return
  }
  func.func @transform_0(%arg0: i32, %arg1: i32) -> (i32, i32, i32) {
    %c0_i32 = arith.constant 0 : i32
    %c0_i32_0 = arith.constant 0 : i32
    %c0_i32_1 = arith.constant 0 : i32
    return %arg0, %c0_i32, %c0_i32_0 : i32, i32, i32
  }
  func.func @transform_1(%arg0: i32, %arg1: i32) -> (i32, i32, i32) {
    %c0_i32 = arith.constant 0 : i32
    %c0_i32_0 = arith.constant 0 : i32
    return %arg0, %c0_i32, %arg1 : i32, i32, i32
  }
  func.func @transform_2(%arg0: i32, %arg1: i32) -> (i32, i32, i32) {
    %c0_i32 = arith.constant 0 : i32
    %c0_i32_0 = arith.constant 0 : i32
    return %arg0, %c0_i32, %arg1 : i32, i32, i32
  }
}

</mosaic_0001>

<llo_original>
// kernel: tpu_custom_call.1
$region0: #{tpu_custom_call.1}
  #allocation0 [shape = 'u32[]', space=smem, size = 0x4, offset = 0x4, fixed_abs, tag = 'smem constant byte address 0x4 - core index']
  #allocation1 [shape = 'u32[144,128]{1,0:T(1,128)}', space=vmem, size = 0x12000, scoped, tag = 'internal scratch']
  %s0 = inlined_call_operand.hbm [shape: f32[2,8,256], index: 0, kind: input, shape index: {}]
  %s1 = inlined_call_operand.hbm [shape: f32[2,8,256], index: 1, kind: input, shape index: {}]
  %s2 = inlined_call_operand.hbm [shape: f32[2,256,256], index: 2, kind: output, shape index: {}]
  %s3 = sld [smem:[#allocation0]]
  $region49: #{tpu_custom_call.1} parent=0
    _
  %s5 = ssub.s32 1, %s3
  %s6 = scalar_select 0, %s5, %s3
  $region1: #{tpu_custom_call.1} parent=0
    #allocation2 [shape = 'u8[16384]{0}', space=vmem, size = 0x4000, scoped, tag = 'input window, operand 0']
    #allocation3 [shape = 's32[2]{0}', space=sflag, size = 0x8, scoped, tag = 'scoped memory for tpu_custom_call.1']
    #allocation4 [shape = 's32[2]{0}', space=sflag, size = 0x8, scoped, tag = 'scoped memory for tpu_custom_call.1']
    #allocation5 [shape = 'u8[16384]{0}', space=vmem, size = 0x4000, scoped, tag = 'input window, operand 1']
    #allocation6 [shape = 's32[2]{0}', space=sflag, size = 0x8, scoped, tag = 'scoped memory for tpu_custom_call.1']
    #allocation7 [shape = 'u8[524288]{0}', space=vmem, size = 0x80000, scoped, tag = 'output window, operand 0']
    %7 = vsyncpa [#allocation3], 0
    %s8 = scalar_lea.sflag [#allocation3], 1
    %9 = vsyncpa %s8, 0
    %10 = vsyncpa [#allocation6], 0
    %s11 = scalar_lea.sflag [#allocation6], 1
    %12 = vsyncpa %s11, 0
    %13 = vsyncpa [#allocation4], 0
    %s14 = scalar_lea.sflag [#allocation4], 1
    %15 = vsyncpa %s14, 0
    loop: start=0, step=1, limit=4
    $region2: #{tpu_custom_call.1} parent=1 // loop_pre_header
      _
    $region3: #{tpu_custom_call.1} parent=1 // loop_header
      %s17 = sphi 0, %s21
      %p18 = scmp.ge.s32.totalorder %s17, 4
      %s24 = sphi 0, %s36
      %s25 = sphi 0, %s32
      %s26 = sphi 0, %s24
      %s27 = sphi 0, %s25
      %s28 = sphi 0, %s26
      %s29 = sphi 0, %s27
      %s39 = sphi 0, %s41
      %s42 = sphi 0, %s39
      %s43 = sphi 0, %s42
      %s59 = sphi 0, %s43
      %s67 = sphi 0, %s69
      %s70 = sphi 0, %s67
      %s71 = sphi 0, %s70
      %s87 = sphi 0, %s71
      %s95 = sphi 0, %s97
      %s98 = sphi 0, %s95
      %s99 = sphi 0, %s98
      %s115 = sphi 0, %s99
    $region4: #{tpu_custom_call.1} parent=1 // loop_header_branch
      %20 = sbr.rel (%p18) target = $region8
    $region5: #{tpu_custom_call.1} parent=1 // loop_body
      %s22 = ssub.s32 %s17, 1
      %s23 = ssub.s32 %s17, 2
      %s30 = sadd.s32 1, %s25
      %p31 = scmp.ge.s32.totalorder %s30, 1
      %s32 = scalar_select %p31, 0, %s30
      %s33 = sadd.s32 1, %s24
      %s34 = scalar_select %p31, %s33, %s24
      %p35 = scmp.ge.s32.totalorder %s34, 2
      %s36 = scalar_select %p35, 0, %s34
      %s37 = ssub.s32 %s24, %s36
      %p38 = scmp.eq.s32.totalorder %s37, 0
      %s40 = sadd.s32 %s39, 1
      %s41 = scalar_select %p38, %s39, %s40
      %p44 = pneg %p38
      %p45 = scmp.eq.s32.totalorder %s17, 1
      %p46 = por %p44, %p45
      %p47 = scmp.ne.s32.totalorder %s39, %s42
      %p48 = scmp.eq.s32.totalorder %s17, 0
      %p49 = por %p47, %p48
      %p50 = scmp.ne.s32.totalorder %s39, %s42
      %p51 = scmp.eq.s32.totalorder %s22, 1
      %p52 = por %p50, %p51
      %p53 = scmp.ne.s32.totalorder %s42, %s43
      %p54 = scmp.eq.s32.totalorder %s22, 0
      %p55 = por %p53, %p54
      %p56 = scmp.ne.s32.totalorder %s42, %s43
      %p57 = scmp.eq.s32.totalorder %s23, 1
      %p58 = por %p56, %p57
      %p60 = scmp.ne.s32.totalorder %s43, %s59
      %p61 = scmp.eq.s32.totalorder %s23, 0
      %p62 = por %p60, %p61
      %s63 = ssub.s32 %s24, %s36
      %s64 = ssub.s32 %s25, %s32
      %s65 = sor.u32 %s63, %s64
      %p66 = scmp.eq.s32.totalorder %s65, 0
      %s68 = sadd.s32 %s67, 1
      %s69 = scalar_select %p66, %s67, %s68
      %p72 = pneg %p66
      %p73 = scmp.eq.s32.totalorder %s17, 1
      %p74 = por %p72, %p73
      %p75 = scmp.ne.s32.totalorder %s67, %s70
      %p76 = scmp.eq.s32.totalorder %s17, 0
      %p77 = por %p75, %p76
      %p78 = scmp.ne.s32.totalorder %s67, %s70
      %p79 = scmp.eq.s32.totalorder %s22, 1
      %p80 = por %p78, %p79
      %p81 = scmp.ne.s32.totalorder %s70, %s71
      %p82 = scmp.eq.s32.totalorder %s22, 0
      %p83 = por %p81, %p82
      %p84 = scmp.ne.s32.totalorder %s70, %s71
      %p85 = scmp.eq.s32.totalorder %s23, 1
      %p86 = por %p84, %p85
      %p88 = scmp.ne.s32.totalorder %s71, %s87
      %p89 = scmp.eq.s32.totalorder %s23, 0
      %p90 = por %p88, %p89
      %s91 = ssub.s32 %s24, %s36
      %s92 = ssub.s32 %s25, %s32
      %s93 = sor.u32 %s91, %s92
      %p94 = scmp.eq.s32.totalorder %s93, 0
      %s96 = sadd.s32 %s95, 1
      %s97 = scalar_select %p94, %s95, %s96
      %p100 = pneg %p94
      %p101 = scmp.eq.s32.totalorder %s17, 1
      %p102 = por %p100, %p101
      %p103 = scmp.ne.s32.totalorder %s95, %s98
      %p104 = scmp.eq.s32.totalorder %s17, 0
      %p105 = por %p103, %p104
      %p106 = scmp.ne.s32.totalorder %s95, %s98
      %p107 = scmp.eq.s32.totalorder %s22, 1
      %p108 = por %p106, %p107
      %p109 = scmp.ne.s32.totalorder %s98, %s99
      %p110 = scmp.eq.s32.totalorder %s22, 0
      %p111 = por %p109, %p110
      %p112 = scmp.ne.s32.totalorder %s98, %s99
      %p113 = scmp.eq.s32.totalorder %s23, 1
      %p114 = por %p112, %p113
      %p116 = scmp.ne.s32.totalorder %s99, %s115
      %p117 = scmp.eq.s32.totalorder %s23, 0
      %p118 = por %p116, %p117
      %p119 = scmp.le.s32.totalorder 1, %s17
      %p120 = scmp.lt.s32.totalorder %s17, 3
      %p121 = pnand %p119, %p120
      %p122 = pneg %p121
      // Predicated region
      $region9: #{tpu_custom_call.1} parent=5 // pred_check
        _
      $region10: #{tpu_custom_call.1} parent=5 // pred_check_branch
        %124 = sbr.rel (%p121) target = $region12
      $region11: #{tpu_custom_call.1} parent=5 // pred_region
        %s125 = ssub.s32 %s17, 1
      $region12: #{tpu_custom_call.1} parent=5 // pred_fallthru
        _
      %p126 = scmp.lt.s32.totalorder %s17, 2
      // Predicated region
      $region13: #{tpu_custom_call.1} parent=5 // pred_check
        %p127 = pneg %p126
      $region14: #{tpu_custom_call.1} parent=5 // pred_check_branch
        %129 = sbr.rel (%p127) target = $region16
      $region15: #{tpu_custom_call.1} parent=5 // pred_region
        // Predicated region
        $region17: #{tpu_custom_call.1} parent=15 // pred_check
          %p130 = pneg %p49
        $region18: #{tpu_custom_call.1} parent=15 // pred_check_branch
          %132 = sbr.rel (%p130) target = $region20
        $region19: #{tpu_custom_call.1} parent=15 // pred_region
          %s133 = sand.u32 %s39, 1
          %s134 = scalar_lea.sflag [#allocation3], %s133
          %s135 = sand.u32 %s39, 1
          %s136 = smul.addr %s135, 16
          %s137 = scalar_lea.vmem [#allocation2], %s136
          %s139 = ssub.s32 256, 256
          %140 = vsyncadd %s134, %s139
          %s141 = smul.addr %s24, 2
          %s142 = smul.addr %s141, 128
          %s143 = scalar_lea.hbm %s0, %s142
          %s145 = sshll.u32 %s137, 4
          %s146 = int_to_ptr.vmem [resolvable:$true] %s145
          %148 = dma.hbm_to_vmem [thread:$0]  %s143, 256, %s146, %s134
        $region20: #{tpu_custom_call.1} parent=15 // pred_fallthru
          _
        // Predicated region
        $region21: #{tpu_custom_call.1} parent=15 // pred_check
          %p149 = pneg %p77
        $region22: #{tpu_custom_call.1} parent=15 // pred_check_branch
          %151 = sbr.rel (%p149) target = $region24
        $region23: #{tpu_custom_call.1} parent=15 // pred_region
          %s152 = sand.u32 %s67, 1
          %s153 = scalar_lea.sflag [#allocation6], %s152
          %s154 = sand.u32 %s67, 1
          %s155 = smul.addr %s154, 16
          %s156 = scalar_lea.vmem [#allocation5], %s155
          %s157 = smul.u32 2, %s25
          %s159 = ssub.s32 256, 256
          %160 = vsyncadd %s153, %s159
          %s161 = smul.addr %s24, 2
          %s162 = sadd.s32 %s157, %s161
          %s163 = smul.addr %s162, 128
          %s164 = scalar_lea.hbm %s1, %s163
          %s166 = sshll.u32 %s156, 4
          %s167 = int_to_ptr.vmem [resolvable:$true] %s166
          %169 = dma.hbm_to_vmem [thread:$0]  %s164, 256, %s167, %s153
        $region24: #{tpu_custom_call.1} parent=15 // pred_fallthru
          _
      $region16: #{tpu_custom_call.1} parent=5 // pred_fallthru
        _
      %p170 = scmp.le.s32.totalorder 1, %s17
      %p171 = scmp.lt.s32.totalorder %s17, 3
      %p172 = pnand %p170, %p171
      %p173 = pneg %p172
      // Predicated region
      $region25: #{tpu_custom_call.1} parent=5 // pred_check
        _
      $region26: #{tpu_custom_call.1} parent=5 // pred_check_branch
        %175 = sbr.rel (%p172) target = $region28
      $region27: #{tpu_custom_call.1} parent=5 // pred_region
        %s176 = ssub.s32 %s17, 1
        %s177 = sand.u32 %s42, 1
        %s178 = scalar_lea.sflag [#allocation3], %s177
        %s179 = sand.u32 %s42, 1
        %s180 = smul.addr %s179, 16
        %s181 = scalar_lea.vmem [#allocation2], %s180
        // Predicated region
        $region29: #{tpu_custom_call.1} parent=27 // pred_check
          %p182 = pneg %p55
        $region30: #{tpu_custom_call.1} parent=27 // pred_check_branch
          %184 = sbr.rel (%p182) target = $region32
        $region31: #{tpu_custom_call.1} parent=27 // pred_region
          %185 = dma.done %s178, 256
        $region32: #{tpu_custom_call.1} parent=27 // pred_fallthru
          _
        %s186 = sand.u32 %s70, 1
        %s187 = scalar_lea.sflag [#allocation6], %s186
        %s188 = sand.u32 %s70, 1
        %s189 = smul.addr %s188, 16
        %s190 = scalar_lea.vmem [#allocation5], %s189
        // Predicated region
        $region33: #{tpu_custom_call.1} parent=27 // pred_check
          %p191 = pneg %p83
        $region34: #{tpu_custom_call.1} parent=27 // pred_check_branch
          %193 = sbr.rel (%p191) target = $region36
        $region35: #{tpu_custom_call.1} parent=27 // pred_region
          %194 = dma.done %s187, 256
        $region36: #{tpu_custom_call.1} parent=27 // pred_fallthru
          _
        %s195 = sand.u32 %s42, 1
        %s196 = scalar_lea.sflag [#allocation3], %s195
        %s197 = sand.u32 %s42, 1
        %s198 = smul.addr %s197, 16
        %s199 = scalar_lea.vmem [#allocation2], %s198
        %p200 = pneg %p55
        %p201 = pneg %p52
        %s202 = sand.u32 %s70, 1
        %s203 = scalar_lea.sflag [#allocation6], %s202
        %s204 = sand.u32 %s70, 1
        %s205 = smul.addr %s204, 16
        %s206 = scalar_lea.vmem [#allocation5], %s205
        %p207 = pneg %p83
        %p208 = pneg %p80
        %p209 = pneg %p111
        %p210 = pneg %p108
        %s211 = sand.u32 %s98, 1
        %s212 = scalar_lea.sflag [#allocation4], %s211
        %s213 = sand.u32 %s98, 1
        %s214 = smul.addr %s213, 512
        %s215 = scalar_lea.vmem [#allocation7], %s214
        %s216 = smul.u32 2, %s27
        %s217 = smul.u32 2, %s27
        %v218 = vld [vmem:[%s181] sm:$0xff]
        %v219 = vld [vmem:[%s181 + $0x8] sm:$0xff]
        %v220 = vld [vmem:[%s190] sm:$0xff]
        %v221 = vld [vmem:[%s190 + $0x8] sm:$0xff]
        %222 = vxpose.xlu0.b32.start [1/16] %v218, 128
        %223 = vxpose.xlu0.b32.cont [2/16] 0.0, 128
        %224 = vxpose.xlu0.b32.cont [3/16] 0.0, 128
        %225 = vxpose.xlu0.b32.cont [4/16] 0.0, 128
        %226 = vxpose.xlu0.b32.cont [5/16] 0.0, 128
        %227 = vxpose.xlu0.b32.cont [6/16] 0.0, 128
        %228 = vxpose.xlu0.b32.cont [7/16] 0.0, 128
        %229 = vxpose.xlu0.b32.cont [8/16] 0.0, 128
        %230 = vxpose.xlu0.b32.cont [9/16] 0.0, 128
        %231 = vxpose.xlu0.b32.cont [10/16] 0.0, 128
        %232 = vxpose.xlu0.b32.cont [11/16] 0.0, 128
        %233 = vxpose.xlu0.b32.cont [12/16] 0.0, 128
        %234 = vxpose.xlu0.b32.cont [13/16] 0.0, 128
        %235 = vxpose.xlu0.b32.cont [14/16] 0.0, 128
        %236 = vxpose.xlu0.b32.cont [15/16] 0.0, 128
        %237 = vxpose.xlu0.b32.end [16/16] 0.0, 128
        %v238 = vpop.trf.xlu0
        %v239 = vpop.trf.xlu0
        %v240 = vpop.trf.xlu0
        %v241 = vpop.trf.xlu0
        %v242 = vpop.trf.xlu0
        %v243 = vpop.trf.xlu0
        %v244 = vpop.trf.xlu0
        %v245 = vpop.trf.xlu0
        %v246 = vpop.trf.xlu0
        %v247 = vpop.trf.xlu0
        %v248 = vpop.trf.xlu0
        %v249 = vpop.trf.xlu0
        %v250 = vpop.trf.xlu0
        %v251 = vpop.trf.xlu0
        %v252 = vpop.trf.xlu0
        %v253 = vpop.trf.xlu0
        %254 = vxpose.xlu0.b32.start [1/16] %v219, 128
        %255 = vxpose.xlu0.b32.cont [2/16] 0.0, 128
        %256 = vxpose.xlu0.b32.cont [3/16] 0.0, 128
        %257 = vxpose.xlu0.b32.cont [4/16] 0.0, 128
        %258 = vxpose.xlu0.b32.cont [5/16] 0.0, 128
        %259 = vxpose.xlu0.b32.cont [6/16] 0.0, 128
        %260 = vxpose.xlu0.b32.cont [7/16] 0.0, 128
        %261 = vxpose.xlu0.b32.cont [8/16] 0.0, 128
        %262 = vxpose.xlu0.b32.cont [9/16] 0.0, 128
        %263 = vxpose.xlu0.b32.cont [10/16] 0.0, 128
        %264 = vxpose.xlu0.b32.cont [11/16] 0.0, 128
        %265 = vxpose.xlu0.b32.cont [12/16] 0.0, 128
        %266 = vxpose.xlu0.b32.cont [13/16] 0.0, 128
        %267 = vxpose.xlu0.b32.cont [14/16] 0.0, 128
        %268 = vxpose.xlu0.b32.cont [15/16] 0.0, 128
        %269 = vxpose.xlu0.b32.end [16/16] 0.0, 128
        %v270 = vpop.trf.xlu0
        %v271 = vpop.trf.xlu0
        %v272 = vpop.trf.xlu0
        %v273 = vpop.trf.xlu0
        %v274 = vpop.trf.xlu0
        %v275 = vpop.trf.xlu0
        %v276 = vpop.trf.xlu0
        %v277 = vpop.trf.xlu0
        %v278 = vpop.trf.xlu0
        %v279 = vpop.trf.xlu0
        %v280 = vpop.trf.xlu0
        %v281 = vpop.trf.xlu0
        %v282 = vpop.trf.xlu0
        %v283 = vpop.trf.xlu0
        %v284 = vpop.trf.xlu0
        %v285 = vpop.trf.xlu0
        %vm286 = vcmask 64512
        %v288 = vsel %vm286, %v238, 0
        %v291 = vsel %vm286, %v239, 0
        %v294 = vsel %vm286, %v240, 0
        %v297 = vsel %vm286, %v241, 0
        %v300 = vsel %vm286, %v242, 0
        %v303 = vsel %vm286, %v243, 0
        %v306 = vsel %vm286, %v244, 0
        %v309 = vsel %vm286, %v245, 0
        %v312 = vsel %vm286, %v246, 0
        %v315 = vsel %vm286, %v247, 0
        %v318 = vsel %vm286, %v248, 0
        %v321 = vsel %vm286, %v249, 0
        %v324 = vsel %vm286, %v250, 0
        %v327 = vsel %vm286, %v251, 0
        %v330 = vsel %vm286, %v252, 0
        %v333 = vsel %vm286, %v253, 0
        %v336 = vsel %vm286, %v270, 0
        %v339 = vsel %vm286, %v271, 0
        %v342 = vsel %vm286, %v272, 0
        %v345 = vsel %vm286, %v273, 0
        %v348 = vsel %vm286, %v274, 0
        %v351 = vsel %vm286, %v275, 0
        %v354 = vsel %vm286, %v276, 0
        %v357 = vsel %vm286, %v277, 0
        %v360 = vsel %vm286, %v278, 0
        %v363 = vsel %vm286, %v279, 0
        %v366 = vsel %vm286, %v280, 0
        %v369 = vsel %vm286, %v281, 0
        %v372 = vsel %vm286, %v282, 0
        %v375 = vsel %vm286, %v283, 0
        %v378 = vsel %vm286, %v284, 0
        %v381 = vsel %vm286, %v285, 0
        %383 = vmatprep.subr.mxu0 0.0
        %384 = vmatpush1.msra.mxu0 0.0
        %385 = vmatprep.subr.mxu0 0.0
        %386 = vmatpush1.msra.mxu0 0.0
        %387 = vmatprep.subr.mxu0 0.0
        %388 = vmatpush1.msra.mxu0 0.0
        %389 = vmatprep.subr.mxu0 0.0
        %390 = vmatpush1.msra.mxu0 0.0
        %391 = vmatprep.subr.mxu0 0.0
        %392 = vmatpush1.msra.mxu0 0.0
        %393 = vmatprep.subr.mxu0 0.0
        %394 = vmatpush1.msra.mxu0 0.0
        %395 = vmatprep.subr.mxu0 0.0
        %396 = vmatpush1.msra.mxu0 0.0
        %397 = vmatprep.subr.mxu0 0.0
        %398 = vmatpush1.msra.mxu0 0.0
        %399 = vmatprep.subr.mxu0 0.0
        %400 = vmatpush1.msra.mxu0 0.0
        %401 = vmatprep.subr.mxu0 0.0
        %402 = vmatpush1.msra.mxu0 0.0
        %403 = vmatprep.subr.mxu0 0.0
        %404 = vmatpush1.msra.mxu0 0.0
        %405 = vmatprep.subr.mxu0 0.0
        %406 = vmatpush1.msra.mxu0 0.0
        %407 = vmatprep.subr.mxu0 0.0
        %408 = vmatpush1.msra.mxu0 0.0
        %409 = vmatprep.subr.mxu0 0.0
        %410 = vmatpush1.msra.mxu0 0.0
        %411 = vmatprep.subr.mxu0 0.0
        %412 = vmatpush1.msra.mxu0 0.0
        %413 = vmatprep.subr.mxu0 %v221
        %414 = vmatpush1.msra.mxu0 %v220
        %415 = vmatprep.subr.mxu0 0.0
        %416 = vmatpush2.msra.mxu0 0.0
        %417 = vmatprep.subr.mxu0 0.0
        %418 = vmatpush2.msra.mxu0 0.0
        %419 = vmatprep.subr.mxu0 0.0
        %420 = vmatpush2.msra.mxu0 0.0
        %421 = vmatprep.subr.mxu0 0.0
        %422 = vmatpush2.msra.mxu0 0.0
        %423 = vmatprep.subr.mxu0 0.0
        %424 = vmatpush2.msra.mxu0 0.0
        %425 = vmatprep.subr.mxu0 0.0
        %426 = vmatpush2.msra.mxu0 0.0
        %427 = vmatprep.subr.mxu0 0.0
        %428 = vmatpush2.msra.mxu0 0.0
        %429 = vmatprep.subr.mxu0 0.0
        %430 = vmatpush2.msra.mxu0 0.0
        %431 = vmatprep.subr.mxu0 0.0
        %432 = vmatpush2.msra.mxu0 0.0
        %433 = vmatprep.subr.mxu0 0.0
        %434 = vmatpush2.msra.mxu0 0.0
        %435 = vmatprep.subr.mxu0 0.0
        %436 = vmatpush2.msra.mxu0 0.0
        %437 = vmatprep.subr.mxu0 0.0
        %438 = vmatpush2.msra.mxu0 0.0
        %439 = vmatprep.subr.mxu0 0.0
        %440 = vmatpush2.msra.mxu0 0.0
        %441 = vmatprep.subr.mxu0 0.0
        %442 = vmatpush2.msra.mxu0 0.0
        %443 = vmatprep.subr.mxu0 0.0
        %444 = vmatpush2.msra.mxu0 0.0
        %445 = vmatprep.subr.mxu0 0.0
        %446 = vmatpush2.msra.mxu0 0.0
        %447 = vmatprep.mubr.f32.mxu0 0.0
        %448 = vmatmul.mubr.f32.gmra.mxu0 %v288
        %v449 = vpop.f32.mrf.mxu0
        %v450 = vadd.f32 0.0, %v449
        %v451 = vpop.f32.mrf.mxu0
        %v452 = vadd.f32 0.0, %v451
        %453 = vmatprep.mubr.f32.mxu0 0.0
        %454 = vmatmul.mubr.f32.gmra.mxu0 %v291
        %v455 = vpop.f32.mrf.mxu0
        %v456 = vadd.f32 0.0, %v455
        %v457 = vpop.f32.mrf.mxu0
        %v458 = vadd.f32 0.0, %v457
        %459 = vmatprep.mubr.f32.mxu0 0.0
        %460 = vmatmul.mubr.f32.gmra.mxu0 %v294
        %v461 = vpop.f32.mrf.mxu0
        %v462 = vadd.f32 0.0, %v461
        %v463 = vpop.f32.mrf.mxu0
        %v464 = vadd.f32 0.0, %v463
        %465 = vmatprep.mubr.f32.mxu0 0.0
        %466 = vmatmul.mubr.f32.gmra.mxu0 %v297
        %v467 = vpop.f32.mrf.mxu0
        %v468 = vadd.f32 0.0, %v467
        %v469 = vpop.f32.mrf.mxu0
        %v470 = vadd.f32 0.0, %v469
        %471 = vmatprep.mubr.f32.mxu0 0.0
        %472 = vmatmul.mubr.f32.gmra.mxu0 %v300
        %v473 = vpop.f32.mrf.mxu0
        %v474 = vadd.f32 0.0, %v473
        %v475 = vpop.f32.mrf.mxu0
        %v476 = vadd.f32 0.0, %v475
        %477 = vmatprep.mubr.f32.mxu0 0.0
        %478 = vmatmul.mubr.f32.gmra.mxu0 %v303
        %v479 = vpop.f32.mrf.mxu0
        %v480 = vadd.f32 0.0, %v479
        %v481 = vpop.f32.mrf.mxu0
        %v482 = vadd.f32 0.0, %v481
        %483 = vmatprep.mubr.f32.mxu0 0.0
        %484 = vmatmul.mubr.f32.gmra.mxu0 %v306
        %v485 = vpop.f32.mrf.mxu0
        %v486 = vadd.f32 0.0, %v485
        %v487 = vpop.f32.mrf.mxu0
        %v488 = vadd.f32 0.0, %v487
        %489 = vmatprep.mubr.f32.mxu0 0.0
        %490 = vmatmul.mubr.f32.gmra.mxu0 %v309
        %v491 = vpop.f32.mrf.mxu0
        %v492 = vadd.f32 0.0, %v491
        %v493 = vpop.f32.mrf.mxu0
        %v494 = vadd.f32 0.0, %v493
        %495 = vmatprep.mubr.f32.mxu0 0.0
        %496 = vmatmul.mubr.f32.gmra.mxu0 %v312
        %v497 = vpop.f32.mrf.mxu0
        %v498 = vadd.f32 0.0, %v497
        %v499 = vpop.f32.mrf.mxu0
        %v500 = vadd.f32 0.0, %v499
        %501 = vmatprep.mubr.f32.mxu0 0.0
        %502 = vmatmul.mubr.f32.gmra.mxu0 %v315
        %v503 = vpop.f32.mrf.mxu0
        %v504 = vadd.f32 0.0, %v503
        %v505 = vpop.f32.mrf.mxu0
        %v506 = vadd.f32 0.0, %v505
        %507 = vmatprep.mubr.f32.mxu0 0.0
        %508 = vmatmul.mubr.f32.gmra.mxu0 %v318
        %v509 = vpop.f32.mrf.mxu0
        %v510 = vadd.f32 0.0, %v509
        %v511 = vpop.f32.mrf.mxu0
        %v512 = vadd.f32 0.0, %v511
        %513 = vmatprep.mubr.f32.mxu0 0.0
        %514 = vmatmul.mubr.f32.gmra.mxu0 %v321
        %v515 = vpop.f32.mrf.mxu0
        %v516 = vadd.f32 0.0, %v515
        %v517 = vpop.f32.mrf.mxu0
        %v518 = vadd.f32 0.0, %v517
        %519 = vmatprep.mubr.f32.mxu0 0.0
        %520 = vmatmul.mubr.f32.gmra.mxu0 %v324
        %v521 = vpop.f32.mrf.mxu0
        %v522 = vadd.f32 0.0, %v521
        %v523 = vpop.f32.mrf.mxu0
        %v524 = vadd.f32 0.0, %v523
        %525 = vmatprep.mubr.f32.mxu0 0.0
        %526 = vmatmul.mubr.f32.gmra.mxu0 %v327
        %v527 = vpop.f32.mrf.mxu0
        %v528 = vadd.f32 0.0, %v527
        %v529 = vpop.f32.mrf.mxu0
        %v530 = vadd.f32 0.0, %v529
        %531 = vmatprep.mubr.f32.mxu0 0.0
        %532 = vmatmul.mubr.f32.gmra.mxu0 %v330
        %v533 = vpop.f32.mrf.mxu0
        %v534 = vadd.f32 0.0, %v533
        %v535 = vpop.f32.mrf.mxu0
        %v536 = vadd.f32 0.0, %v535
        %537 = vmatprep.mubr.f32.mxu0 0.0
        %538 = vmatmul.mubr.f32.gmra.mxu0 %v333
        %v539 = vpop.f32.mrf.mxu0
        %v540 = vadd.f32 0.0, %v539
        %v541 = vpop.f32.mrf.mxu0
        %v542 = vadd.f32 0.0, %v541
        %543 = vmatprep.mubr.f32.mxu0 0.0
        %544 = vmatmul.mubr.f32.gmra.mxu0 %v336
        %v545 = vpop.f32.mrf.mxu0
        %v546 = vadd.f32 0.0, %v545
        %v547 = vpop.f32.mrf.mxu0
        %v548 = vadd.f32 0.0, %v547
        %549 = vmatprep.mubr.f32.mxu0 0.0
        %550 = vmatmul.mubr.f32.gmra.mxu0 %v339
        %v551 = vpop.f32.mrf.mxu0
        %v552 = vadd.f32 0.0, %v551
        %v553 = vpop.f32.mrf.mxu0
        %v554 = vadd.f32 0.0, %v553
        %555 = vmatprep.mubr.f32.mxu0 0.0
        %556 = vmatmul.mubr.f32.gmra.mxu0 %v342
        %v557 = vpop.f32.mrf.mxu0
        %v558 = vadd.f32 0.0, %v557
        %v559 = vpop.f32.mrf.mxu0
        %v560 = vadd.f32 0.0, %v559
        %561 = vmatprep.mubr.f32.mxu0 0.0
        %562 = vmatmul.mubr.f32.gmra.mxu0 %v345
        %v563 = vpop.f32.mrf.mxu0
        %v564 = vadd.f32 0.0, %v563
        %v565 = vpop.f32.mrf.mxu0
        %v566 = vadd.f32 0.0, %v565
        %567 = vmatprep.mubr.f32.mxu0 0.0
        %568 = vmatmul.mubr.f32.gmra.mxu0 %v348
        %v569 = vpop.f32.mrf.mxu0
        %v570 = vadd.f32 0.0, %v569
        %v571 = vpop.f32.mrf.mxu0
        %v572 = vadd.f32 0.0, %v571
        %573 = vmatprep.mubr.f32.mxu0 0.0
        %574 = vmatmul.mubr.f32.gmra.mxu0 %v351
        %v575 = vpop.f32.mrf.mxu0
        %v576 = vadd.f32 0.0, %v575
        %v577 = vpop.f32.mrf.mxu0
        %v578 = vadd.f32 0.0, %v577
        %579 = vmatprep.mubr.f32.mxu0 0.0
        %580 = vmatmul.mubr.f32.gmra.mxu0 %v354
        %v581 = vpop.f32.mrf.mxu0
        %v582 = vadd.f32 0.0, %v581
        %v583 = vpop.f32.mrf.mxu0
        %v584 = vadd.f32 0.0, %v583
        %585 = vmatprep.mubr.f32.mxu0 0.0
        %586 = vmatmul.mubr.f32.gmra.mxu0 %v357
        %v587 = vpop.f32.mrf.mxu0
        %v588 = vadd.f32 0.0, %v587
        %v589 = vpop.f32.mrf.mxu0
        %v590 = vadd.f32 0.0, %v589
        %591 = vmatprep.mubr.f32.mxu0 0.0
        %592 = vmatmul.mubr.f32.gmra.mxu0 %v360
        %v593 = vpop.f32.mrf.mxu0
        %v594 = vadd.f32 0.0, %v593
        %v595 = vpop.f32.mrf.mxu0
        %v596 = vadd.f32 0.0, %v595
        %597 = vmatprep.mubr.f32.mxu0 0.0
        %598 = vmatmul.mubr.f32.gmra.mxu0 %v363
        %v599 = vpop.f32.mrf.mxu0
        %v600 = vadd.f32 0.0, %v599
        %v601 = vpop.f32.mrf.mxu0
        %v602 = vadd.f32 0.0, %v601
        %603 = vmatprep.mubr.f32.mxu0 0.0
        %604 = vmatmul.mubr.f32.gmra.mxu0 %v366
        %v605 = vpop.f32.mrf.mxu0
        %v606 = vadd.f32 0.0, %v605
        %v607 = vpop.f32.mrf.mxu0
        %v608 = vadd.f32 0.0, %v607
        %609 = vmatprep.mubr.f32.mxu0 0.0
        %610 = vmatmul.mubr.f32.gmra.mxu0 %v369
        %v611 = vpop.f32.mrf.mxu0
        %v612 = vadd.f32 0.0, %v611
        %v613 = vpop.f32.mrf.mxu0
        %v614 = vadd.f32 0.0, %v613
        %615 = vmatprep.mubr.f32.mxu0 0.0
        %616 = vmatmul.mubr.f32.gmra.mxu0 %v372
        %v617 = vpop.f32.mrf.mxu0
        %v618 = vadd.f32 0.0, %v617
        %v619 = vpop.f32.mrf.mxu0
        %v620 = vadd.f32 0.0, %v619
        %621 = vmatprep.mubr.f32.mxu0 0.0
        %622 = vmatmul.mubr.f32.gmra.mxu0 %v375
        %v623 = vpop.f32.mrf.mxu0
        %v624 = vadd.f32 0.0, %v623
        %v625 = vpop.f32.mrf.mxu0
        %v626 = vadd.f32 0.0, %v625
        %627 = vmatprep.mubr.f32.mxu0 0.0
        %628 = vmatmul.mubr.f32.gmra.mxu0 %v378
        %v629 = vpop.f32.mrf.mxu0
        %v630 = vadd.f32 0.0, %v629
        %v631 = vpop.f32.mrf.mxu0
        %v632 = vadd.f32 0.0, %v631
        %633 = vmatprep.mubr.f32.mxu0 0.0
        %634 = vmatmul.mubr.f32.gmra.mxu0 %v381
        %v635 = vpop.f32.mrf.mxu0
        %v636 = vadd.f32 0.0, %v635
        %v637 = vpop.f32.mrf.mxu0
        %v638 = vadd.f32 0.0, %v637
        %639 = vdwg.mxu0
        %v640 = vmax.f32 %v450, 0.0
        %v641 = vmax.f32 %v452, 0.0
        %v642 = vmax.f32 %v456, 0.0
        %v643 = vmax.f32 %v458, 0.0
        %v644 = vmax.f32 %v462, 0.0
        %v645 = vmax.f32 %v464, 0.0
        %v646 = vmax.f32 %v468, 0.0
        %v647 = vmax.f32 %v470, 0.0
        %v648 = vmax.f32 %v474, 0.0
        %v649 = vmax.f32 %v476, 0.0
        %v650 = vmax.f32 %v480, 0.0
        %v651 = vmax.f32 %v482, 0.0
        %v652 = vmax.f32 %v486, 0.0
        %v653 = vmax.f32 %v488, 0.0
        %v654 = vmax.f32 %v492, 0.0
        %v655 = vmax.f32 %v494, 0.0
        %v656 = vmax.f32 %v498, 0.0
        %v657 = vmax.f32 %v500, 0.0
        %v658 = vmax.f32 %v504, 0.0
        %v659 = vmax.f32 %v506, 0.0
        %v660 = vmax.f32 %v510, 0.0
        %v661 = vmax.f32 %v512, 0.0
        %v662 = vmax.f32 %v516, 0.0
        %v663 = vmax.f32 %v518, 0.0
        %v664 = vmax.f32 %v522, 0.0
        %v665 = vmax.f32 %v524, 0.0
        %v666 = vmax.f32 %v528, 0.0
        %v667 = vmax.f32 %v530, 0.0
        %v668 = vmax.f32 %v534, 0.0
        %v669 = vmax.f32 %v536, 0.0
        %v670 = vmax.f32 %v540, 0.0
        %v671 = vmax.f32 %v542, 0.0
        %v672 = vmax.f32 %v546, 0.0
        %v673 = vmax.f32 %v548, 0.0
        %v674 = vmax.f32 %v552, 0.0
        %v675 = vmax.f32 %v554, 0.0
        %v676 = vmax.f32 %v558, 0.0
        %v677 = vmax.f32 %v560, 0.0
        %v678 = vmax.f32 %v564, 0.0
        %v679 = vmax.f32 %v566, 0.0
        %v680 = vmax.f32 %v570, 0.0
        %v681 = vmax.f32 %v572, 0.0
        %v682 = vmax.f32 %v576, 0.0
        %v683 = vmax.f32 %v578, 0.0
        %v684 = vmax.f32 %v582, 0.0
        %v685 = vmax.f32 %v584, 0.0
        %v686 = vmax.f32 %v588, 0.0
        %v687 = vmax.f32 %v590, 0.0
        %v688 = vmax.f32 %v594, 0.0
        %v689 = vmax.f32 %v596, 0.0
        %v690 = vmax.f32 %v600, 0.0
        %v691 = vmax.f32 %v602, 0.0
        %v692 = vmax.f32 %v606, 0.0
        %v693 = vmax.f32 %v608, 0.0
        %v694 = vmax.f32 %v612, 0.0
        %v695 = vmax.f32 %v614, 0.0
        %v696 = vmax.f32 %v618, 0.0
        %v697 = vmax.f32 %v620, 0.0
        %v698 = vmax.f32 %v624, 0.0
        %v699 = vmax.f32 %v626, 0.0
        %v700 = vmax.f32 %v630, 0.0
        %v701 = vmax.f32 %v632, 0.0
        %v702 = vmax.f32 %v636, 0.0
        %v703 = vmax.f32 %v638, 0.0
        %v704 = vmul.f32 %v640, %v640
        %v705 = vmul.f32 %v641, %v641
        %v706 = vmul.f32 %v642, %v642
        %v707 = vmul.f32 %v643, %v643
        %v708 = vmul.f32 %v644, %v644
        %v709 = vmul.f32 %v645, %v645
        %v710 = vmul.f32 %v646, %v646
        %v711 = vmul.f32 %v647, %v647
        %v712 = vmul.f32 %v648, %v648
        %v713 = vmul.f32 %v649, %v649
        %v714 = vmul.f32 %v650, %v650
        %v715 = vmul.f32 %v651, %v651
        %v716 = vmul.f32 %v652, %v652
        %v717 = vmul.f32 %v653, %v653
        %v718 = vmul.f32 %v654, %v654
        %v719 = vmul.f32 %v655, %v655
        %v720 = vmul.f32 %v656, %v656
        %v721 = vmul.f32 %v657, %v657
        %v722 = vmul.f32 %v658, %v658
        %v723 = vmul.f32 %v659, %v659
        %v724 = vmul.f32 %v660, %v660
        %v725 = vmul.f32 %v661, %v661
        %v726 = vmul.f32 %v662, %v662
        %v727 = vmul.f32 %v663, %v663
        %v728 = vmul.f32 %v664, %v664
        %v729 = vmul.f32 %v665, %v665
        %v730 = vmul.f32 %v666, %v666
        %v731 = vmul.f32 %v667, %v667
        %v732 = vmul.f32 %v668, %v668
        %v733 = vmul.f32 %v669, %v669
        %v734 = vmul.f32 %v670, %v670
        %v735 = vmul.f32 %v671, %v671
        %v736 = vmul.f32 %v672, %v672
        %v737 = vmul.f32 %v673, %v673
        %v738 = vmul.f32 %v674, %v674
        %v739 = vmul.f32 %v675, %v675
        %v740 = vmul.f32 %v676, %v676
        %v741 = vmul.f32 %v677, %v677
        %v742 = vmul.f32 %v678, %v678
        %v743 = vmul.f32 %v679, %v679
        %v744 = vmul.f32 %v680, %v680
        %v745 = vmul.f32 %v681, %v681
        %v746 = vmul.f32 %v682, %v682
        %v747 = vmul.f32 %v683, %v683
        %v748 = vmul.f32 %v684, %v684
        %v749 = vmul.f32 %v685, %v685
        %v750 = vmul.f32 %v686, %v686
        %v751 = vmul.f32 %v687, %v687
        %v752 = vmul.f32 %v688, %v688
        %v753 = vmul.f32 %v689, %v689
        %v754 = vmul.f32 %v690, %v690
        %v755 = vmul.f32 %v691, %v691
        %v756 = vmul.f32 %v692, %v692
        %v757 = vmul.f32 %v693, %v693
        %v758 = vmul.f32 %v694, %v694
        %v759 = vmul.f32 %v695, %v695
        %v760 = vmul.f32 %v696, %v696
        %v761 = vmul.f32 %v697, %v697
        %v762 = vmul.f32 %v698, %v698
        %v763 = vmul.f32 %v699, %v699
        %v764 = vmul.f32 %v700, %v700
        %v765 = vmul.f32 %v701, %v701
        %v766 = vmul.f32 %v702, %v702
        %v767 = vmul.f32 %v703, %v703
        %v768 = vadd.f32 %v704, %v706
        %v769 = vadd.f32 %v768, %v708
        %v770 = vadd.f32 %v769, %v710
        %v771 = vadd.f32 %v770, %v712
        %v772 = vadd.f32 %v771, %v714
        %v773 = vadd.f32 %v772, %v716
        %v774 = vadd.f32 %v773, %v718
        %v775 = vadd.f32 %v774, %v720
        %v776 = vadd.f32 %v775, %v722
        %v777 = vadd.f32 %v776, %v724
        %v778 = vadd.f32 %v777, %v726
        %v779 = vadd.f32 %v778, %v728
        %v780 = vadd.f32 %v779, %v730
        %v781 = vadd.f32 %v780, %v732
        %v782 = vadd.f32 %v781, %v734
        %v783 = vadd.f32 %v782, %v736
        %v784 = vadd.f32 %v783, %v738
        %v785 = vadd.f32 %v784, %v740
        %v786 = vadd.f32 %v785, %v742
        %v787 = vadd.f32 %v786, %v744
        %v788 = vadd.f32 %v787, %v746
        %v789 = vadd.f32 %v788, %v748
        %v790 = vadd.f32 %v789, %v750
        %v791 = vadd.f32 %v790, %v752
        %v792 = vadd.f32 %v791, %v754
        %v793 = vadd.f32 %v792, %v756
        %v794 = vadd.f32 %v793, %v758
        %v795 = vadd.f32 %v794, %v760
        %v796 = vadd.f32 %v795, %v762
        %v797 = vadd.f32 %v796, %v764
        %v798 = vadd.f32 %v797, %v766
        %v799 = vrot.slane %v798, 4
        %v800 = vadd.f32 %v798, %v799
        %v801 = vrot.slane %v800, 2
        %v802 = vadd.f32 %v800, %v801
        %v803 = vrot.slane %v802, 1
        %v804 = vadd.f32 %v802, %v803
        %v805 = vadd.f32 %v705, %v707
        %v806 = vadd.f32 %v805, %v709
        %v807 = vadd.f32 %v806, %v711
        %v808 = vadd.f32 %v807, %v713
        %v809 = vadd.f32 %v808, %v715
        %v810 = vadd.f32 %v809, %v717
        %v811 = vadd.f32 %v810, %v719
        %v812 = vadd.f32 %v811, %v721
        %v813 = vadd.f32 %v812, %v723
        %v814 = vadd.f32 %v813, %v725
        %v815 = vadd.f32 %v814, %v727
        %v816 = vadd.f32 %v815, %v729
        %v817 = vadd.f32 %v816, %v731
        %v818 = vadd.f32 %v817, %v733
        %v819 = vadd.f32 %v818, %v735
        %v820 = vadd.f32 %v819, %v737
        %v821 = vadd.f32 %v820, %v739
        %v822 = vadd.f32 %v821, %v741
        %v823 = vadd.f32 %v822, %v743
        %v824 = vadd.f32 %v823, %v745
        %v825 = vadd.f32 %v824, %v747
        %v826 = vadd.f32 %v825, %v749
        %v827 = vadd.f32 %v826, %v751
        %v828 = vadd.f32 %v827, %v753
        %v829 = vadd.f32 %v828, %v755
        %v830 = vadd.f32 %v829, %v757
        %v831 = vadd.f32 %v830, %v759
        %v832 = vadd.f32 %v831, %v761
        %v833 = vadd.f32 %v832, %v763
        %v834 = vadd.f32 %v833, %v765
        %v835 = vadd.f32 %v834, %v767
        %v836 = vrot.slane %v835, 4
        %v837 = vadd.f32 %v835, %v836
        %v838 = vrot.slane %v837, 2
        %v839 = vadd.f32 %v837, %v838
        %v840 = vrot.slane %v839, 1
        %v841 = vadd.f32 %v839, %v840
        %v842 = vadd.f32 %v804, 1e-06
        %v843 = vadd.f32 %v841, 1e-06
        %v844 = vrsqrt.pop %v842
        %v845 = vrsqrt.pop %v843
        %v846 = vmul.f32 %v640, %v844
        %v847 = vmul.f32 %v641, %v845
        %v848 = vmul.f32 %v642, %v844
        %v849 = vmul.f32 %v643, %v845
        %v850 = vmul.f32 %v644, %v844
        %v851 = vmul.f32 %v645, %v845
        %v852 = vmul.f32 %v646, %v844
        %v853 = vmul.f32 %v647, %v845
        %v854 = vmul.f32 %v648, %v844
        %v855 = vmul.f32 %v649, %v845
        %v856 = vmul.f32 %v650, %v844
        %v857 = vmul.f32 %v651, %v845
        %v858 = vmul.f32 %v652, %v844
        %v859 = vmul.f32 %v653, %v845
        %v860 = vmul.f32 %v654, %v844
        %v861 = vmul.f32 %v655, %v845
        %v862 = vmul.f32 %v656, %v844
        %v863 = vmul.f32 %v657, %v845
        %v864 = vmul.f32 %v658, %v844
        %v865 = vmul.f32 %v659, %v845
        %v866 = vmul.f32 %v660, %v844
        %v867 = vmul.f32 %v661, %v845
        %v868 = vmul.f32 %v662, %v844
        %v869 = vmul.f32 %v663, %v845
        %v870 = vmul.f32 %v664, %v844
        %v871 = vmul.f32 %v665, %v845
        %v872 = vmul.f32 %v666, %v844
        %v873 = vmul.f32 %v667, %v845
        %v874 = vmul.f32 %v668, %v844
        %v875 = vmul.f32 %v669, %v845
        %v876 = vmul.f32 %v670, %v844
        %v877 = vmul.f32 %v671, %v845
        %v878 = vmul.f32 %v672, %v844
        %v879 = vmul.f32 %v673, %v845
        %v880 = vmul.f32 %v674, %v844
        %v881 = vmul.f32 %v675, %v845
        %v882 = vmul.f32 %v676, %v844
        %v883 = vmul.f32 %v677, %v845
        %v884 = vmul.f32 %v678, %v844
        %v885 = vmul.f32 %v679, %v845
        %v886 = vmul.f32 %v680, %v844
        %v887 = vmul.f32 %v681, %v845
        %v888 = vmul.f32 %v682, %v844
        %v889 = vmul.f32 %v683, %v845
        %v890 = vmul.f32 %v684, %v844
        %v891 = vmul.f32 %v685, %v845
        %v892 = vmul.f32 %v686, %v844
        %v893 = vmul.f32 %v687, %v845
        %v894 = vmul.f32 %v688, %v844
        %v895 = vmul.f32 %v689, %v845
        %v896 = vmul.f32 %v690, %v844
        %v897 = vmul.f32 %v691, %v845
        %v898 = vmul.f32 %v692, %v844
        %v899 = vmul.f32 %v693, %v845
        %v900 = vmul.f32 %v694, %v844
        %v901 = vmul.f32 %v695, %v845
        %v902 = vmul.f32 %v696, %v844
        %v903 = vmul.f32 %v697, %v845
        %v904 = vmul.f32 %v698, %v844
        %v905 = vmul.f32 %v699, %v845
        %v906 = vmul.f32 %v700, %v844
        %v907 = vmul.f32 %v701, %v845
        %v908 = vmul.f32 %v702, %v844
        %v909 = vmul.f32 %v703, %v845
        %910 = vst [vmem:[%s215] sm:$0xff] %v846
        %911 = vst [vmem:[%s215 + $0x8] sm:$0xff] %v847
        %912 = vst [vmem:[%s215 + $0x10] sm:$0xff] %v848
        %913 = vst [vmem:[%s215 + $0x18] sm:$0xff] %v849
        %914 = vst [vmem:[%s215 + $0x20] sm:$0xff] %v850
        %915 = vst [vmem:[%s215 + $0x28] sm:$0xff] %v851
        %916 = vst [vmem:[%s215 + $0x30] sm:$0xff] %v852
        %917 = vst [vmem:[%s215 + $0x38] sm:$0xff] %v853
        %918 = vst [vmem:[%s215 + $0x40] sm:$0xff] %v854
        %919 = vst [vmem:[%s215 + $0x48] sm:$0xff] %v855
        %920 = vst [vmem:[%s215 + $0x50] sm:$0xff] %v856
        %921 = vst [vmem:[%s215 + $0x58] sm:$0xff] %v857
        %922 = vst [vmem:[%s215 + $0x60] sm:$0xff] %v858
        %923 = vst [vmem:[%s215 + $0x68] sm:$0xff] %v859
        %924 = vst [vmem:[%s215 + $0x70] sm:$0xff] %v860
        %925 = vst [vmem:[%s215 + $0x78] sm:$0xff] %v861
        %926 = vst [vmem:[%s215 + $0x80] sm:$0xff] %v862
        %927 = vst [vmem:[%s215 + $0x88] sm:$0xff] %v863
        %928 = vst [vmem:[%s215 + $0x90] sm:$0xff] %v864
        %929 = vst [vmem:[%s215 + $0x98] sm:$0xff] %v865
        %930 = vst [vmem:[%s215 + $0xa0] sm:$0xff] %v866
        %931 = vst [vmem:[%s215 + $0xa8] sm:$0xff] %v867
        %932 = vst [vmem:[%s215 + $0xb0] sm:$0xff] %v868
        %933 = vst [vmem:[%s215 + $0xb8] sm:$0xff] %v869
        %934 = vst [vmem:[%s215 + $0xc0] sm:$0xff] %v870
        %935 = vst [vmem:[%s215 + $0xc8] sm:$0xff] %v871
        %936 = vst [vmem:[%s215 + $0xd0] sm:$0xff] %v872
        %937 = vst [vmem:[%s215 + $0xd8] sm:$0xff] %v873
        %938 = vst [vmem:[%s215 + $0xe0] sm:$0xff] %v874
        %939 = vst [vmem:[%s215 + $0xe8] sm:$0xff] %v875
        %940 = vst [vmem:[%s215 + $0xf0] sm:$0xff] %v876
        %941 = vst [vmem:[%s215 + $0xf8] sm:$0xff] %v877
        %942 = vst [vmem:[%s215 + $0x100] sm:$0xff] %v878
        %943 = vst [vmem:[%s215 + $0x108] sm:$0xff] %v879
        %944 = vst [vmem:[%s215 + $0x110] sm:$0xff] %v880
        %945 = vst [vmem:[%s215 + $0x118] sm:$0xff] %v881
        %946 = vst [vmem:[%s215 + $0x120] sm:$0xff] %v882
        %947 = vst [vmem:[%s215 + $0x128] sm:$0xff] %v883
        %948 = vst [vmem:[%s215 + $0x130] sm:$0xff] %v884
        %949 = vst [vmem:[%s215 + $0x138] sm:$0xff] %v885
        %950 = vst [vmem:[%s215 + $0x140] sm:$0xff] %v886
        %951 = vst [vmem:[%s215 + $0x148] sm:$0xff] %v887
        %952 = vst [vmem:[%s215 + $0x150] sm:$0xff] %v888
        %953 = vst [vmem:[%s215 + $0x158] sm:$0xff] %v889
        %954 = vst [vmem:[%s215 + $0x160] sm:$0xff] %v890
        %955 = vst [vmem:[%s215 + $0x168] sm:$0xff] %v891
        %956 = vst [vmem:[%s215 + $0x170] sm:$0xff] %v892
        %957 = vst [vmem:[%s215 + $0x178] sm:$0xff] %v893
        %958 = vst [vmem:[%s215 + $0x180] sm:$0xff] %v894
        %959 = vst [vmem:[%s215 + $0x188] sm:$0xff] %v895
        %960 = vst [vmem:[%s215 + $0x190] sm:$0xff] %v896
        %961 = vst [vmem:[%s215 + $0x198] sm:$0xff] %v897
        %962 = vst [vmem:[%s215 + $0x1a0] sm:$0xff] %v898
        %963 = vst [vmem:[%s215 + $0x1a8] sm:$0xff] %v899
        %964 = vst [vmem:[%s215 + $0x1b0] sm:$0xff] %v900
        %965 = vst [vmem:[%s215 + $0x1b8] sm:$0xff] %v901
        %966 = vst [vmem:[%s215 + $0x1c0] sm:$0xff] %v902
        %967 = vst [vmem:[%s215 + $0x1c8] sm:$0xff] %v903
        %968 = vst [vmem:[%s215 + $0x1d0] sm:$0xff] %v904
        %969 = vst [vmem:[%s215 + $0x1d8] sm:$0xff] %v905
        %970 = vst [vmem:[%s215 + $0x1e0] sm:$0xff] %v906
        %971 = vst [vmem:[%s215 + $0x1e8] sm:$0xff] %v907
        %972 = vst [vmem:[%s215 + $0x1f0] sm:$0xff] %v908
        %973 = vst [vmem:[%s215 + $0x1f8] sm:$0xff] %v909
        %s974 = sand.u32 %s98, 1
        %s975 = scalar_lea.sflag [#allocation4], %s974
        %s976 = sand.u32 %s98, 1
        %s977 = smul.addr %s976, 512
        %s978 = scalar_lea.vmem [#allocation7], %s977
        // Predicated region
        $region37: #{tpu_custom_call.1} parent=27 // pred_check
          %p979 = pneg %p108
        $region38: #{tpu_custom_call.1} parent=27 // pred_check_branch
          %981 = sbr.rel (%p979) target = $region40
        $region39: #{tpu_custom_call.1} parent=27 // pred_region
          %s982 = smul.u32 2, %s27
          %s984 = ssub.s32 8192, 8192
          %985 = vsyncadd %s975, %s984
          %s986 = smul.addr %s26, 64
          %s987 = sadd.s32 %s982, %s986
          %s988 = smul.addr %s987, 128
          %s989 = scalar_lea.hbm %s2, %s988
          %s990 = sshll.u32 %s978, 4
          %s991 = int_to_ptr.vmem [resolvable:$true] %s990
          %996 = dma.vmem_to_hbm [thread:$0]  %s991, 8192, %s989, %s975, 256, 256, 16
        $region40: #{tpu_custom_call.1} parent=27 // pred_fallthru
          _
      $region28: #{tpu_custom_call.1} parent=5 // pred_fallthru
        _
      %p997 = scmp.le.s32.totalorder 2, %s17
      // Predicated region
      $region41: #{tpu_custom_call.1} parent=5 // pred_check
        %p998 = pneg %p997
      $region42: #{tpu_custom_call.1} parent=5 // pred_check_branch
        %1000 = sbr.rel (%p998) target = $region44
      $region43: #{tpu_custom_call.1} parent=5 // pred_region
        %s1001 = ssub.s32 %s17, 2
        // Predicated region
        $region45: #{tpu_custom_call.1} parent=43 // pred_check
          %p1002 = pneg %p114
        $region46: #{tpu_custom_call.1} parent=43 // pred_check_branch
          %1004 = sbr.rel (%p1002) target = $region48
        $region47: #{tpu_custom_call.1} parent=43 // pred_region
          %s1005 = sand.u32 %s99, 1
          %s1006 = scalar_lea.sflag [#allocation4], %s1005
          %s1007 = sand.u32 %s99, 1
          %s1008 = smul.addr %s1007, 512
          %s1009 = scalar_lea.vmem [#allocation7], %s1008
          %1010 = dma.done %s1006, 8192
        $region48: #{tpu_custom_call.1} parent=43 // pred_fallthru
          _
      $region44: #{tpu_custom_call.1} parent=5 // pred_fallthru
        _
    $region6: #{tpu_custom_call.1} parent=1 // loop_footer
      %s21 = sadd.s32 1, %s17
    $region7: #{tpu_custom_call.1} parent=1 // loop_footer_branch
      %16 = sbr.rel target = $region3
    $region8: #{tpu_custom_call.1} parent=1 // loop_exit
      _
    %1011 = vsyncpa [#allocation3], 1
    %s1012 = scalar_lea.sflag [#allocation3], 1
    %1013 = vsyncpa %s1012, 1
    %1014 = vsyncpa [#allocation6], 1
    %s1015 = scalar_lea.sflag [#allocation6], 1
    %1016 = vsyncpa %s1015, 1
    %1017 = vsyncpa [#allocation4], 1
    %s1018 = scalar_lea.sflag [#allocation4], 1
    %1019 = vsyncpa %s1018, 1

</llo_original>
